<compile_context>
chip_gen: v6e
topology: v6e:2x2x1
jax: 0.10.0
libtpu: 0.0.40
codegen_flags: <defaults>
</compile_context>

<pallas_src>
import math

import jax
import jax.numpy as jnp
from jax.experimental import pallas as pl
from jax.experimental.pallas import tpu as pltpu


def _round_up(a, m):
    return (a + m - 1) // m * m


# --------------------------------------------------------------------------- #
# Pallas kernel: one-hot MXU gather of block_rows table rows per grid step.
# --------------------------------------------------------------------------- #
def _pe_onehot_gather_kernel(idx_ref, pe_ref, o_ref):
    idx = idx_ref[...]                                   # (block_rows, 1) int32
    n_rows = pe_ref.shape[0]                             # padded table rows
    iota = jax.lax.broadcasted_iota(jnp.int32, (idx.shape[0], n_rows), 1)
    one_hot = (iota == idx).astype(pe_ref.dtype)         # (block_rows, n_rows)
    # HIGHEST precision => f32 values pass through the MXU exactly
    # (every output row is 1.0 * pe[row], all other terms are 0).
    o_ref[...] = jnp.dot(
        one_hot, pe_ref[...],
        preferred_element_type=jnp.float32,
        precision=jax.lax.Precision.HIGHEST,
    ).astype(o_ref.dtype)


def positional_embedding_lookup(pe_table, x, *, block_rows=512,
                                min_kernel_rows=512):
    """out[...] = pe_table[x[...]]   (forward of PositionalEmbedding)."""
    max_len, d_model = pe_table.shape
    idx_flat = x.reshape(-1).astype(jnp.int32)
    t = idx_flat.shape[0]

    # Small lookups: XLA's native gather of a 96-row table beats the fixed
    # pallas_call launch + per-step overhead.
    if t < min_kernel_rows:
        return pe_table[idx_flat].reshape(x.shape + (d_model,))

    # Pad the table row axis to a multiple of 128 (zero rows, done once) so
    # the one-hot contraction dim is lane-aligned for the MXU.
    max_len_pad = _round_up(max_len, 128)
    pe_pad = pe_table
    if max_len_pad != max_len:
        pe_pad = jnp.pad(pe_table, ((0, max_len_pad - max_len), (0, 0)))

    # block_rows: multiple of 8, big enough to amortize per-step overhead,
    # capped so the "parallel" grid axis keeps >= 2 steps (v7x megacore).
    t8 = _round_up(t, 8)
    half = max(8, (t8 // 2) // 8 * 8)
    block_rows = max(8, min(_round_up(block_rows, 8), half))
    grid = pl.cdiv(t, block_rows)

    idx_2d = idx_flat.reshape(t, 1)

    out = pl.pallas_call(
        _pe_onehot_gather_kernel,
        out_shape=jax.ShapeDtypeStruct((t, d_model), pe_table.dtype),
        grid=(grid,),
        in_specs=[
            # Per-step index block (VMEM).
            pl.BlockSpec((block_rows, 1), lambda i: (i, 0)),
            # Whole (padded) table: constant block index -> stays VMEM-resident.
            pl.BlockSpec((max_len_pad, d_model), lambda i: (0, 0)),
        ],
        out_specs=pl.BlockSpec((block_rows, d_model), lambda i: (i, 0)),
        compiler_params=pltpu.CompilerParams(
            dimension_semantics=("parallel",)),          # independent row blocks
    )(idx_2d, pe_pad)

    return out.reshape(x.shape + (d_model,))


# --------------------------------------------------------------------------- #
# Plain-JAX glue: build the fixed sinusoidal table (the __init__ buffer).
# --------------------------------------------------------------------------- #
def build_pe_table(max_len, d_model):
    position = jnp.arange(max_len, dtype=jnp.float32)[:, None]
    div_term = jnp.exp(jnp.arange(0, d_model, 2, dtype=jnp.float32)
                       * (-math.log(10000.0) / d_model))
    pe = jnp.zeros((max_len, d_model), jnp.float32)
    pe = pe.at[:, 0::2].set(jnp.sin(position * div_term))
    pe = pe.at[:, 1::2].set(jnp.cos(position * div_term))
    return pe


# --------------------------------------------------------------------------- #
if __name__ == "__main__":
    max_len = 24 * 4          # 96, as in the module spec
    d_model = 256
    batch, seq = 2, 8

    key = jax.random.PRNGKey(0)
    pe_table = build_pe_table(max_len, d_model)
    x = jax.random.randint(key, (batch, seq), 0, max_len, dtype=jnp.int32)

    # min_kernel_rows=0 forces the Pallas path for this small demo
    # (production callers keep the default and let tiny lookups go to XLA).
    out = positional_embedding_lookup(pe_table, x, min_kernel_rows=0)
    out = jax.block_until_ready(out)

    ref = pe_table[x]                                  # pure-JAX reference
    assert out.shape == (batch, seq, d_model)
    assert jnp.allclose(out, ref), "mismatch vs reference"

    print("KERNEL_OK")
</pallas_src>

<mosaic_0001>
module attributes {stable_mosaic.version = 11 : i64} {
  func.func @_pe_onehot_gather_kernel(%arg0: i32, %arg1: memref<8x1xi32, #tpu.memory_space<vmem>>, %arg2: memref<128x256xf32, #tpu.memory_space<vmem>>, %arg3: memref<8x256xf32, #tpu.memory_space<vmem>>) attributes {dimension_semantics = [#tpu.dimension_semantics<parallel>], iteration_bounds = array<i64: 2>, scalar_prefetch = 0 : i64, scratch_operands = 0 : i64, tpu.core_type = #tpu.core_type<tc>, window_params = [{transform_indices = @transform_0, window_bounds = array<i64: 8, 1>}, {pipeline_mode = #tpu.pipeline_mode<synchronous>, transform_indices = @transform_1, window_bounds = array<i64: 128, 256>}, {transform_indices = @transform_2, window_bounds = array<i64: 8, 256>}]} {
    %c0 = arith.constant 0 : index
    %c0_0 = arith.constant 0 : index
    %0 = vector.load %arg1[%c0, %c0_0] : memref<8x1xi32, #tpu.memory_space<vmem>>, vector<8x1xi32>
    %1 = tpu.iota {dimensions = array<i32: 1>} : vector<8x128xi32>
    %2 = vector.broadcast %0 : vector<8x1xi32> to vector<8x128xi32>
    %3 = arith.cmpi eq, %1, %2 : vector<8x128xi32>
    %4 = arith.extui %3 : vector<8x128xi1> to vector<8x128xi32>
    %5 = arith.sitofp %4 : vector<8x128xi32> to vector<8x128xf32>
    %c0_1 = arith.constant 0 : index
    %c0_2 = arith.constant 0 : index
    %6 = vector.load %arg2[%c0_1, %c0_2] : memref<128x256xf32, #tpu.memory_space<vmem>>, vector<128x256xf32>
    %cst = arith.constant dense<0.000000e+00> : vector<8x256xf32>
    %7 = tpu.matmul %5, %6, %cst {dimension_numbers = #tpu.dot_dimension_numbers<[1], [0], [0], [1], [0, 0, 1, 1], [], []>, precision = #tpu.contract_precision<fp32>} : vector<8x128xf32>, vector<128x256xf32>, vector<8x256xf32> -> vector<8x256xf32>
    %c0_3 = arith.constant 0 : index
    %c0_4 = arith.constant 0 : index
    %8 = vector.load %arg3[%c0_3, %c0_4] : memref<8x256xf32, #tpu.memory_space<vmem>>, vector<8x256xf32>
    tpu.vector_store %arg3[%c0_3, %c0_4], %7 {strides = array<i32>} : memref<8x256xf32, #tpu.memory_space<vmem>>, vector<8x256xf32>,
    return
  }
  func.func @transform_0(%arg0: i32) -> (i32, i32) {
    %c0_i32 = arith.constant 0 : i32
    %c0_i32_0 = arith.constant 0 : i32
    return %arg0, %c0_i32 : i32, i32
  }
  func.func @transform_1(%arg0: i32) -> (i32, i32) {
    %c0_i32 = arith.constant 0 : i32
    %c0_i32_0 = arith.constant 0 : i32
    %c0_i32_1 = arith.constant 0 : i32
    return %c0_i32, %c0_i32_0 : i32, i32
  }
  func.func @transform_2(%arg0: i32) -> (i32, i32) {
    %c0_i32 = arith.constant 0 : i32
    %c0_i32_0 = arith.constant 0 : i32
    return %arg0, %c0_i32 : i32, i32
  }
}

</mosaic_0001>

<llo_original>
// kernel: tpu_custom_call.1
$region0: #{tpu_custom_call.1}
  #allocation0 [shape = 'u32[]', space=smem, size = 0x4, offset = 0x4, fixed_abs, tag = 'smem constant byte address 0x4 - core index']
  #allocation1 [shape = 'u32[144,128]{1,0:T(1,128)}', space=vmem, size = 0x12000, scoped, tag = 'internal scratch']
  %s0 = inlined_call_operand.vmem [shape: s32[16,1], index: 0, kind: input, shape index: {}]
  %s1 = inlined_call_operand.hbm [shape: f32[128,256], index: 1, kind: input, shape index: {}]
  %s2 = inlined_call_operand.hbm [shape: f32[16,256], index: 2, kind: output, shape index: {}]
  %s3 = sld [smem:[#allocation0]]
  $region45: #{tpu_custom_call.1} parent=0
    _
  %s5 = ssub.s32 1, %s3
  %s6 = scalar_select 0, %s5, %s3
  $region1: #{tpu_custom_call.1} parent=0
    #allocation2 [shape = 'u8[131072]{0}', space=vmem, size = 0x20000, scoped, tag = 'input window, operand 1, single buffered']
    #allocation3 [shape = 's32[2]{0}', space=sflag, size = 0x8, scoped, tag = 'scoped memory for tpu_custom_call.1']
    #allocation4 [shape = 's32[2]{0}', space=sflag, size = 0x8, scoped, tag = 'scoped memory for tpu_custom_call.1']
    #allocation5 [shape = 'u8[16384]{0}', space=vmem, size = 0x4000, scoped, tag = 'output window, operand 0']
    %7 = vsyncpa [#allocation3], 0
    %8 = vsyncpa [#allocation4], 0
    %s9 = scalar_lea.sflag [#allocation4], 1
    %10 = vsyncpa %s9, 0
    loop: start=0, step=1, limit=4
    $region2: #{tpu_custom_call.1} parent=1 // loop_pre_header
      _
    $region3: #{tpu_custom_call.1} parent=1 // loop_header
      %s12 = sphi 0, %s16
      %p13 = scmp.ge.s32.totalorder %s12, 4
      %s22 = sphi 0, %s24
      %s25 = sphi 0, %s22
      %s26 = sphi 0, %s25
      %s42 = sphi 0, %s26
      %s46 = sphi 0, %s46
      %s48 = sphi 0, %s46
      %s49 = sphi 0, %s48
      %s63 = sphi 0, %s49
      %s69 = sphi 0, %s71
      %s72 = sphi 0, %s69
      %s73 = sphi 0, %s72
      %s89 = sphi 0, %s73
    $region4: #{tpu_custom_call.1} parent=1 // loop_header_branch
      %15 = sbr.rel (%p13) target = $region8
    $region5: #{tpu_custom_call.1} parent=1 // loop_body
      %s17 = ssub.s32 %s12, 1
      %s18 = ssub.s32 %s12, 2
      %s19 = sadd.s32 %s12, 1
      %s20 = ssub.s32 %s12, %s19
      %p21 = scmp.eq.s32.totalorder %s20, 0
      %s23 = sadd.s32 %s22, 1
      %s24 = scalar_select %p21, %s22, %s23
      %p27 = pneg %p21
      %p28 = scmp.eq.s32.totalorder %s12, 1
      %p29 = por %p27, %p28
      %p30 = scmp.ne.s32.totalorder %s22, %s25
      %p31 = scmp.eq.s32.totalorder %s12, 0
      %p32 = por %p30, %p31
      %p33 = scmp.ne.s32.totalorder %s22, %s25
      %p34 = scmp.eq.s32.totalorder %s17, 1
      %p35 = por %p33, %p34
      %p36 = scmp.ne.s32.totalorder %s25, %s26
      %p37 = scmp.eq.s32.totalorder %s17, 0
      %p38 = por %p36, %p37
      %p39 = scmp.ne.s32.totalorder %s25, %s26
      %p40 = scmp.eq.s32.totalorder %s18, 1
      %p41 = por %p39, %p40
      %p43 = scmp.ne.s32.totalorder %s26, %s42
      %p44 = scmp.eq.s32.totalorder %s18, 0
      %p45 = por %p43, %p44
      %s47 = sadd.s32 %s46, 1
      %p50 = scmp.eq.s32.totalorder %s12, 1
      %p51 = scmp.ne.s32.totalorder %s46, %s48
      %p52 = scmp.eq.s32.totalorder %s12, 0
      %p53 = por %p51, %p52
      %p54 = scmp.ne.s32.totalorder %s46, %s48
      %p55 = scmp.eq.s32.totalorder %s17, 1
      %p56 = por %p54, %p55
      %p57 = scmp.ne.s32.totalorder %s48, %s49
      %p58 = scmp.eq.s32.totalorder %s17, 0
      %p59 = por %p57, %p58
      %p60 = scmp.ne.s32.totalorder %s48, %s49
      %p61 = scmp.eq.s32.totalorder %s18, 1
      %p62 = por %p60, %p61
      %p64 = scmp.ne.s32.totalorder %s49, %s63
      %p65 = scmp.eq.s32.totalorder %s18, 0
      %p66 = por %p64, %p65
      %s67 = ssub.s32 %s12, %s19
      %p68 = scmp.eq.s32.totalorder %s67, 0
      %s70 = sadd.s32 %s69, 1
      %s71 = scalar_select %p68, %s69, %s70
      %p74 = pneg %p68
      %p75 = scmp.eq.s32.totalorder %s12, 1
      %p76 = por %p74, %p75
      %p77 = scmp.ne.s32.totalorder %s69, %s72
      %p78 = scmp.eq.s32.totalorder %s12, 0
      %p79 = por %p77, %p78
      %p80 = scmp.ne.s32.totalorder %s69, %s72
      %p81 = scmp.eq.s32.totalorder %s17, 1
      %p82 = por %p80, %p81
      %p83 = scmp.ne.s32.totalorder %s72, %s73
      %p84 = scmp.eq.s32.totalorder %s17, 0
      %p85 = por %p83, %p84
      %p86 = scmp.ne.s32.totalorder %s72, %s73
      %p87 = scmp.eq.s32.totalorder %s18, 1
      %p88 = por %p86, %p87
      %p90 = scmp.ne.s32.totalorder %s73, %s89
      %p91 = scmp.eq.s32.totalorder %s18, 0
      %p92 = por %p90, %p91
      %p93 = scmp.le.s32.totalorder 1, %s12
      %p94 = scmp.lt.s32.totalorder %s12, 3
      %p95 = pnand %p93, %p94
      %p96 = pneg %p95
      // Predicated region
      $region9: #{tpu_custom_call.1} parent=5 // pred_check
        _
      $region10: #{tpu_custom_call.1} parent=5 // pred_check_branch
        %98 = sbr.rel (%p95) target = $region12
      $region11: #{tpu_custom_call.1} parent=5 // pred_region
        %s99 = ssub.s32 %s12, 1
        // Predicated region
        $region13: #{tpu_custom_call.1} parent=11 // pred_check
          %p100 = pneg %p59
        $region14: #{tpu_custom_call.1} parent=11 // pred_check_branch
          %102 = sbr.rel (%p100) target = $region16
        $region15: #{tpu_custom_call.1} parent=11 // pred_region
          %s104 = ssub.s32 4096, 4096
          %105 = vsyncadd [#allocation3], %s104
          %s106 = sshll.u32 [#allocation2], 4
          %s107 = int_to_ptr.vmem [resolvable:$true] %s106
          %112 = dma.hbm_to_vmem [thread:$0]  %s1, 4096, %s107, [#allocation3], 256, 256, 16
        $region16: #{tpu_custom_call.1} parent=11 // pred_fallthru
          _
      $region12: #{tpu_custom_call.1} parent=5 // pred_fallthru
        _
      %p113 = scmp.lt.s32.totalorder %s12, 2
      // Predicated region
      $region17: #{tpu_custom_call.1} parent=5 // pred_check
        %p114 = pneg %p113
      $region18: #{tpu_custom_call.1} parent=5 // pred_check_branch
        %116 = sbr.rel (%p114) target = $region20
      $region19: #{tpu_custom_call.1} parent=5 // pred_region
        // Predicated region
        $region21: #{tpu_custom_call.1} parent=19 // pred_check
          %p117 = pneg %p32
        $region22: #{tpu_custom_call.1} parent=19 // pred_check_branch
          %119 = sbr.rel (%p117) target = $region24
        $region23: #{tpu_custom_call.1} parent=19 // pred_region
          %p120 = scmp.lt.s32.totalorder %s12, 1
          %s121 = scalar_select %p120, %s12, 1
          %s122 = smul.addr %s121, 8
          %s123 = scalar_lea.vmem %s0, %s122
        $region24: #{tpu_custom_call.1} parent=19 // pred_fallthru
          _
      $region20: #{tpu_custom_call.1} parent=5 // pred_fallthru
        _
      %p124 = scmp.le.s32.totalorder 1, %s12
      %p125 = scmp.lt.s32.totalorder %s12, 3
      %p126 = pnand %p124, %p125
      %p127 = pneg %p126
      // Predicated region
      $region25: #{tpu_custom_call.1} parent=5 // pred_check
        _
      $region26: #{tpu_custom_call.1} parent=5 // pred_check_branch
        %129 = sbr.rel (%p126) target = $region28
      $region27: #{tpu_custom_call.1} parent=5 // pred_region
        %s130 = ssub.s32 %s12, 1
        // Predicated region
        $region29: #{tpu_custom_call.1} parent=27 // pred_check
          %p131 = pneg %p59
        $region30: #{tpu_custom_call.1} parent=27 // pred_check_branch
          %133 = sbr.rel (%p131) target = $region32
        $region31: #{tpu_custom_call.1} parent=27 // pred_region
          %134 = dma.done [#allocation3], 4096
        $region32: #{tpu_custom_call.1} parent=27 // pred_fallthru
          _
        %p135 = scmp.lt.s32.totalorder %s17, 1
        %s136 = scalar_select %p135, %s17, 1
        %s137 = smul.addr %s136, 8
        %s138 = scalar_lea.vmem %s0, %s137
        %p139 = pneg %p38
        %p140 = pneg %p35
        %p141 = pneg %p59
        %p142 = pneg %p56
        %p143 = pneg %p85
        %p144 = pneg %p82
        %s145 = sand.u32 %s72, 1
        %s146 = scalar_lea.sflag [#allocation4], %s145
        %s147 = sand.u32 %s72, 1
        %s148 = smul.addr %s147, 16
        %s149 = scalar_lea.vmem [#allocation5], %s148
        %p150 = scmp.lt.s32.totalorder %s17, 1
        %s151 = scalar_select %p150, %s17, 1
        %s152 = smul.addr %s151, 8
        %s153 = scalar_lea.vmem %s0, %s152
        %v154 = vld [vmem:[%s153] sm:$0xff]
        %v155 = vlaneseq
        %v156 = vand.u32 %v155, 127
        %157 = vset.pattern.permute.xlu0 0
        %158 = vperm.xlu0 %157, %v154
        %v159 = vpop.permute.xlu0 %158
        %vm160 = vcmp.eq.s32.totalorder %v156, %v159
        %v161 = vsel %vm160, 1, 0
        %v162 = vcvt.s32.f32 %v161
        %v163 = vld [vmem:[#allocation2] sm:$0xff]
        %v164 = vld [vmem:[#allocation2 + $0x8] sm:$0xff]
        %v165 = vld [vmem:[#allocation2 + $0x10] sm:$0xff]
        %v166 = vld [vmem:[#allocation2 + $0x18] sm:$0xff]
        %v167 = vld [vmem:[#allocation2 + $0x20] sm:$0xff]
        %v168 = vld [vmem:[#allocation2 + $0x28] sm:$0xff]
        %v169 = vld [vmem:[#allocation2 + $0x30] sm:$0xff]
        %v170 = vld [vmem:[#allocation2 + $0x38] sm:$0xff]
        %v171 = vld [vmem:[#allocation2 + $0x40] sm:$0xff]
        %v172 = vld [vmem:[#allocation2 + $0x48] sm:$0xff]
        %v173 = vld [vmem:[#allocation2 + $0x50] sm:$0xff]
        %v174 = vld [vmem:[#allocation2 + $0x58] sm:$0xff]
        %v175 = vld [vmem:[#allocation2 + $0x60] sm:$0xff]
        %v176 = vld [vmem:[#allocation2 + $0x68] sm:$0xff]
        %v177 = vld [vmem:[#allocation2 + $0x70] sm:$0xff]
        %v178 = vld [vmem:[#allocation2 + $0x78] sm:$0xff]
        %v179 = vld [vmem:[#allocation2 + $0x80] sm:$0xff]
        %v180 = vld [vmem:[#allocation2 + $0x88] sm:$0xff]
        %v181 = vld [vmem:[#allocation2 + $0x90] sm:$0xff]
        %v182 = vld [vmem:[#allocation2 + $0x98] sm:$0xff]
        %v183 = vld [vmem:[#allocation2 + $0xa0] sm:$0xff]
        %v184 = vld [vmem:[#allocation2 + $0xa8] sm:$0xff]
        %v185 = vld [vmem:[#allocation2 + $0xb0] sm:$0xff]
        %v186 = vld [vmem:[#allocation2 + $0xb8] sm:$0xff]
        %v187 = vld [vmem:[#allocation2 + $0xc0] sm:$0xff]
        %v188 = vld [vmem:[#allocation2 + $0xc8] sm:$0xff]
        %v189 = vld [vmem:[#allocation2 + $0xd0] sm:$0xff]
        %v190 = vld [vmem:[#allocation2 + $0xd8] sm:$0xff]
        %v191 = vld [vmem:[#allocation2 + $0xe0] sm:$0xff]
        %v192 = vld [vmem:[#allocation2 + $0xe8] sm:$0xff]
        %v193 = vld [vmem:[#allocation2 + $0xf0] sm:$0xff]
        %v194 = vld [vmem:[#allocation2 + $0xf8] sm:$0xff]
        %v195 = vand.u32 %v194, 4294901760
        %196 = vmatprep.subr.mxu0 %v195
        %v197 = vand.u32 %v193, 4294901760
        %198 = vmatpush1.msra.mxu0 %v197
        %v199 = vand.u32 %v192, 4294901760
        %200 = vmatprep.subr.mxu0 %v199
        %v201 = vand.u32 %v191, 4294901760
        %202 = vmatpush1.msra.mxu0 %v201
        %v203 = vand.u32 %v190, 4294901760
        %204 = vmatprep.subr.mxu0 %v203
        %v205 = vand.u32 %v189, 4294901760
        %206 = vmatpush1.msra.mxu0 %v205
        %v207 = vand.u32 %v188, 4294901760
        %208 = vmatprep.subr.mxu0 %v207
        %v209 = vand.u32 %v187, 4294901760
        %210 = vmatpush1.msra.mxu0 %v209
        %v211 = vand.u32 %v186, 4294901760
        %212 = vmatprep.subr.mxu0 %v211
        %v213 = vand.u32 %v185, 4294901760
        %214 = vmatpush1.msra.mxu0 %v213
        %v215 = vand.u32 %v184, 4294901760
        %216 = vmatprep.subr.mxu0 %v215
        %v217 = vand.u32 %v183, 4294901760
        %218 = vmatpush1.msra.mxu0 %v217
        %v219 = vand.u32 %v182, 4294901760
        %220 = vmatprep.subr.mxu0 %v219
        %v221 = vand.u32 %v181, 4294901760
        %222 = vmatpush1.msra.mxu0 %v221
        %v223 = vand.u32 %v180, 4294901760
        %224 = vmatprep.subr.mxu0 %v223
        %v225 = vand.u32 %v179, 4294901760
        %226 = vmatpush1.msra.mxu0 %v225
        %v227 = vand.u32 %v178, 4294901760
        %228 = vmatprep.subr.mxu0 %v227
        %v229 = vand.u32 %v177, 4294901760
        %230 = vmatpush1.msra.mxu0 %v229
        %v231 = vand.u32 %v176, 4294901760
        %232 = vmatprep.subr.mxu0 %v231
        %v233 = vand.u32 %v175, 4294901760
        %234 = vmatpush1.msra.mxu0 %v233
        %v235 = vand.u32 %v174, 4294901760
        %236 = vmatprep.subr.mxu0 %v235
        %v237 = vand.u32 %v173, 4294901760
        %238 = vmatpush1.msra.mxu0 %v237
        %v239 = vand.u32 %v172, 4294901760
        %240 = vmatprep.subr.mxu0 %v239
        %v241 = vand.u32 %v171, 4294901760
        %242 = vmatpush1.msra.mxu0 %v241
        %v243 = vand.u32 %v170, 4294901760
        %244 = vmatprep.subr.mxu0 %v243
        %v245 = vand.u32 %v169, 4294901760
        %246 = vmatpush1.msra.mxu0 %v245
        %v247 = vand.u32 %v168, 4294901760
        %248 = vmatprep.subr.mxu0 %v247
        %v249 = vand.u32 %v167, 4294901760
        %250 = vmatpush1.msra.mxu0 %v249
        %v251 = vand.u32 %v166, 4294901760
        %252 = vmatprep.subr.mxu0 %v251
        %v253 = vand.u32 %v165, 4294901760
        %254 = vmatpush1.msra.mxu0 %v253
        %v255 = vand.u32 %v164, 4294901760
        %256 = vmatprep.subr.mxu0 %v255
        %v257 = vand.u32 %v163, 4294901760
        %258 = vmatpush1.msra.mxu0 %v257
        %259 = vmatprep.subr.mxu0 0.0
        %260 = vmatpush2.msra.mxu0 0.0
        %261 = vmatprep.subr.mxu0 0.0
        %262 = vmatpush2.msra.mxu0 0.0
        %263 = vmatprep.subr.mxu0 0.0
        %264 = vmatpush2.msra.mxu0 0.0
        %265 = vmatprep.subr.mxu0 0.0
        %266 = vmatpush2.msra.mxu0 0.0
        %267 = vmatprep.subr.mxu0 0.0
        %268 = vmatpush2.msra.mxu0 0.0
        %269 = vmatprep.subr.mxu0 0.0
        %270 = vmatpush2.msra.mxu0 0.0
        %271 = vmatprep.subr.mxu0 0.0
        %272 = vmatpush2.msra.mxu0 0.0
        %273 = vmatprep.subr.mxu0 0.0
        %274 = vmatpush2.msra.mxu0 0.0
        %275 = vmatprep.subr.mxu0 0.0
        %276 = vmatpush2.msra.mxu0 0.0
        %277 = vmatprep.subr.mxu0 0.0
        %278 = vmatpush2.msra.mxu0 0.0
        %279 = vmatprep.subr.mxu0 0.0
        %280 = vmatpush2.msra.mxu0 0.0
        %281 = vmatprep.subr.mxu0 0.0
        %282 = vmatpush2.msra.mxu0 0.0
        %283 = vmatprep.subr.mxu0 0.0
        %284 = vmatpush2.msra.mxu0 0.0
        %285 = vmatprep.subr.mxu0 0.0
        %286 = vmatpush2.msra.mxu0 0.0
        %287 = vmatprep.subr.mxu0 0.0
        %288 = vmatpush2.msra.mxu0 0.0
        %289 = vmatprep.subr.mxu0 0.0
        %290 = vmatpush2.msra.mxu0 0.0
        %291 = vmatprep.mubr.f32.mxu0 0.0
        %v292 = vand.u32 %v162, 4294901760
        %v293 = vsub.f32 %v162, %v292
        %v294 = vand.u32 %v293, 4294901760
        %v295 = vsub.f32 %v293, %v294
        %v296 = vand.u32 %v295, 4294901760
        %297 = vmatmul.mubr.f32.gmra.mxu0 %v296
        %v298 = vpop.f32.mrf.mxu0
        %v299 = vadd.f32 0.0, %v298
        %v300 = vpop.f32.mrf.mxu0
        %v301 = vadd.f32 0.0, %v300
        %302 = vdwg.mxu0
        %v303 = vand.u32 %v194, 4294901760
        %v304 = vsub.f32 %v194, %v303
        %v305 = vand.u32 %v304, 4294901760
        %v306 = vsub.f32 %v304, %v305
        %v307 = vand.u32 %v306, 4294901760
        %308 = vmatprep.subr.mxu0 %v307
        %v309 = vand.u32 %v193, 4294901760
        %v310 = vsub.f32 %v193, %v309
        %v311 = vand.u32 %v310, 4294901760
        %v312 = vsub.f32 %v310, %v311
        %v313 = vand.u32 %v312, 4294901760
        %314 = vmatpush1.msra.mxu0 %v313
        %v315 = vand.u32 %v192, 4294901760
        %v316 = vsub.f32 %v192, %v315
        %v317 = vand.u32 %v316, 4294901760
        %v318 = vsub.f32 %v316, %v317
        %v319 = vand.u32 %v318, 4294901760
        %320 = vmatprep.subr.mxu0 %v319
        %v321 = vand.u32 %v191, 4294901760
        %v322 = vsub.f32 %v191, %v321
        %v323 = vand.u32 %v322, 4294901760
        %v324 = vsub.f32 %v322, %v323
        %v325 = vand.u32 %v324, 4294901760
        %326 = vmatpush1.msra.mxu0 %v325
        %v327 = vand.u32 %v190, 4294901760
        %v328 = vsub.f32 %v190, %v327
        %v329 = vand.u32 %v328, 4294901760
        %v330 = vsub.f32 %v328, %v329
        %v331 = vand.u32 %v330, 4294901760
        %332 = vmatprep.subr.mxu0 %v331
        %v333 = vand.u32 %v189, 4294901760
        %v334 = vsub.f32 %v189, %v333
        %v335 = vand.u32 %v334, 4294901760
        %v336 = vsub.f32 %v334, %v335
        %v337 = vand.u32 %v336, 4294901760
        %338 = vmatpush1.msra.mxu0 %v337
        %v339 = vand.u32 %v188, 4294901760
        %v340 = vsub.f32 %v188, %v339
        %v341 = vand.u32 %v340, 4294901760
        %v342 = vsub.f32 %v340, %v341
        %v343 = vand.u32 %v342, 4294901760
        %344 = vmatprep.subr.mxu0 %v343
        %v345 = vand.u32 %v187, 4294901760
        %v346 = vsub.f32 %v187, %v345
        %v347 = vand.u32 %v346, 4294901760
        %v348 = vsub.f32 %v346, %v347
        %v349 = vand.u32 %v348, 4294901760
        %350 = vmatpush1.msra.mxu0 %v349
        %v351 = vand.u32 %v186, 4294901760
        %v352 = vsub.f32 %v186, %v351
        %v353 = vand.u32 %v352, 4294901760
        %v354 = vsub.f32 %v352, %v353
        %v355 = vand.u32 %v354, 4294901760
        %356 = vmatprep.subr.mxu0 %v355
        %v357 = vand.u32 %v185, 4294901760
        %v358 = vsub.f32 %v185, %v357
        %v359 = vand.u32 %v358, 4294901760
        %v360 = vsub.f32 %v358, %v359
        %v361 = vand.u32 %v360, 4294901760
        %362 = vmatpush1.msra.mxu0 %v361
        %v363 = vand.u32 %v184, 4294901760
        %v364 = vsub.f32 %v184, %v363
        %v365 = vand.u32 %v364, 4294901760
        %v366 = vsub.f32 %v364, %v365
        %v367 = vand.u32 %v366, 4294901760
        %368 = vmatprep.subr.mxu0 %v367
        %v369 = vand.u32 %v183, 4294901760
        %v370 = vsub.f32 %v183, %v369
        %v371 = vand.u32 %v370, 4294901760
        %v372 = vsub.f32 %v370, %v371
        %v373 = vand.u32 %v372, 4294901760
        %374 = vmatpush1.msra.mxu0 %v373
        %v375 = vand.u32 %v182, 4294901760
        %v376 = vsub.f32 %v182, %v375
        %v377 = vand.u32 %v376, 4294901760
        %v378 = vsub.f32 %v376, %v377
        %v379 = vand.u32 %v378, 4294901760
        %380 = vmatprep.subr.mxu0 %v379
        %v381 = vand.u32 %v181, 4294901760
        %v382 = vsub.f32 %v181, %v381
        %v383 = vand.u32 %v382, 4294901760
        %v384 = vsub.f32 %v382, %v383
        %v385 = vand.u32 %v384, 4294901760
        %386 = vmatpush1.msra.mxu0 %v385
        %v387 = vand.u32 %v180, 4294901760
        %v388 = vsub.f32 %v180, %v387
        %v389 = vand.u32 %v388, 4294901760
        %v390 = vsub.f32 %v388, %v389
        %v391 = vand.u32 %v390, 4294901760
        %392 = vmatprep.subr.mxu0 %v391
        %v393 = vand.u32 %v179, 4294901760
        %v394 = vsub.f32 %v179, %v393
        %v395 = vand.u32 %v394, 4294901760
        %v396 = vsub.f32 %v394, %v395
        %v397 = vand.u32 %v396, 4294901760
        %398 = vmatpush1.msra.mxu0 %v397
        %v399 = vand.u32 %v178, 4294901760
        %v400 = vsub.f32 %v178, %v399
        %v401 = vand.u32 %v400, 4294901760
        %v402 = vsub.f32 %v400, %v401
        %v403 = vand.u32 %v402, 4294901760
        %404 = vmatprep.subr.mxu0 %v403
        %v405 = vand.u32 %v177, 4294901760
        %v406 = vsub.f32 %v177, %v405
        %v407 = vand.u32 %v406, 4294901760
        %v408 = vsub.f32 %v406, %v407
        %v409 = vand.u32 %v408, 4294901760
        %410 = vmatpush1.msra.mxu0 %v409
        %v411 = vand.u32 %v176, 4294901760
        %v412 = vsub.f32 %v176, %v411
        %v413 = vand.u32 %v412, 4294901760
        %v414 = vsub.f32 %v412, %v413
        %v415 = vand.u32 %v414, 4294901760
        %416 = vmatprep.subr.mxu0 %v415
        %v417 = vand.u32 %v175, 4294901760
        %v418 = vsub.f32 %v175, %v417
        %v419 = vand.u32 %v418, 4294901760
        %v420 = vsub.f32 %v418, %v419
        %v421 = vand.u32 %v420, 4294901760
        %422 = vmatpush1.msra.mxu0 %v421
        %v423 = vand.u32 %v174, 4294901760
        %v424 = vsub.f32 %v174, %v423
        %v425 = vand.u32 %v424, 4294901760
        %v426 = vsub.f32 %v424, %v425
        %v427 = vand.u32 %v426, 4294901760
        %428 = vmatprep.subr.mxu0 %v427
        %v429 = vand.u32 %v173, 4294901760
        %v430 = vsub.f32 %v173, %v429
        %v431 = vand.u32 %v430, 4294901760
        %v432 = vsub.f32 %v430, %v431
        %v433 = vand.u32 %v432, 4294901760
        %434 = vmatpush1.msra.mxu0 %v433
        %v435 = vand.u32 %v172, 4294901760
        %v436 = vsub.f32 %v172, %v435
        %v437 = vand.u32 %v436, 4294901760
        %v438 = vsub.f32 %v436, %v437
        %v439 = vand.u32 %v438, 4294901760
        %440 = vmatprep.subr.mxu0 %v439
        %v441 = vand.u32 %v171, 4294901760
        %v442 = vsub.f32 %v171, %v441
        %v443 = vand.u32 %v442, 4294901760
        %v444 = vsub.f32 %v442, %v443
        %v445 = vand.u32 %v444, 4294901760
        %446 = vmatpush1.msra.mxu0 %v445
        %v447 = vand.u32 %v170, 4294901760
        %v448 = vsub.f32 %v170, %v447
        %v449 = vand.u32 %v448, 4294901760
        %v450 = vsub.f32 %v448, %v449
        %v451 = vand.u32 %v450, 4294901760
        %452 = vmatprep.subr.mxu0 %v451
        %v453 = vand.u32 %v169, 4294901760
        %v454 = vsub.f32 %v169, %v453
        %v455 = vand.u32 %v454, 4294901760
        %v456 = vsub.f32 %v454, %v455
        %v457 = vand.u32 %v456, 4294901760
        %458 = vmatpush1.msra.mxu0 %v457
        %v459 = vand.u32 %v168, 4294901760
        %v460 = vsub.f32 %v168, %v459
        %v461 = vand.u32 %v460, 4294901760
        %v462 = vsub.f32 %v460, %v461
        %v463 = vand.u32 %v462, 4294901760
        %464 = vmatprep.subr.mxu0 %v463
        %v465 = vand.u32 %v167, 4294901760
        %v466 = vsub.f32 %v167, %v465
        %v467 = vand.u32 %v466, 4294901760
        %v468 = vsub.f32 %v466, %v467
        %v469 = vand.u32 %v468, 4294901760
        %470 = vmatpush1.msra.mxu0 %v469
        %v471 = vand.u32 %v166, 4294901760
        %v472 = vsub.f32 %v166, %v471
        %v473 = vand.u32 %v472, 4294901760
        %v474 = vsub.f32 %v472, %v473
        %v475 = vand.u32 %v474, 4294901760
        %476 = vmatprep.subr.mxu0 %v475
        %v477 = vand.u32 %v165, 4294901760
        %v478 = vsub.f32 %v165, %v477
        %v479 = vand.u32 %v478, 4294901760
        %v480 = vsub.f32 %v478, %v479
        %v481 = vand.u32 %v480, 4294901760
        %482 = vmatpush1.msra.mxu0 %v481
        %v483 = vand.u32 %v164, 4294901760
        %v484 = vsub.f32 %v164, %v483
        %v485 = vand.u32 %v484, 4294901760
        %v486 = vsub.f32 %v484, %v485
        %v487 = vand.u32 %v486, 4294901760
        %488 = vmatprep.subr.mxu0 %v487
        %v489 = vand.u32 %v163, 4294901760
        %v490 = vsub.f32 %v163, %v489
        %v491 = vand.u32 %v490, 4294901760
        %v492 = vsub.f32 %v490, %v491
        %v493 = vand.u32 %v492, 4294901760
        %494 = vmatpush1.msra.mxu0 %v493
        %495 = vmatprep.subr.mxu0 0.0
        %496 = vmatpush2.msra.mxu0 0.0
        %497 = vmatprep.subr.mxu0 0.0
        %498 = vmatpush2.msra.mxu0 0.0
        %499 = vmatprep.subr.mxu0 0.0
        %500 = vmatpush2.msra.mxu0 0.0
        %501 = vmatprep.subr.mxu0 0.0
        %502 = vmatpush2.msra.mxu0 0.0
        %503 = vmatprep.subr.mxu0 0.0
        %504 = vmatpush2.msra.mxu0 0.0
        %505 = vmatprep.subr.mxu0 0.0
        %506 = vmatpush2.msra.mxu0 0.0
        %507 = vmatprep.subr.mxu0 0.0
        %508 = vmatpush2.msra.mxu0 0.0
        %509 = vmatprep.subr.mxu0 0.0
        %510 = vmatpush2.msra.mxu0 0.0
        %511 = vmatprep.subr.mxu0 0.0
        %512 = vmatpush2.msra.mxu0 0.0
        %513 = vmatprep.subr.mxu0 0.0
        %514 = vmatpush2.msra.mxu0 0.0
        %515 = vmatprep.subr.mxu0 0.0
        %516 = vmatpush2.msra.mxu0 0.0
        %517 = vmatprep.subr.mxu0 0.0
        %518 = vmatpush2.msra.mxu0 0.0
        %519 = vmatprep.subr.mxu0 0.0
        %520 = vmatpush2.msra.mxu0 0.0
        %521 = vmatprep.subr.mxu0 0.0
        %522 = vmatpush2.msra.mxu0 0.0
        %523 = vmatprep.subr.mxu0 0.0
        %524 = vmatpush2.msra.mxu0 0.0
        %525 = vmatprep.subr.mxu0 0.0
        %526 = vmatpush2.msra.mxu0 0.0
        %527 = vmatprep.mubr.f32.mxu0 0.0
        %v528 = vand.u32 %v162, 4294901760
        %529 = vmatmul.mubr.f32.gmra.mxu0 %v528
        %v530 = vpop.f32.mrf.mxu0
        %v531 = vadd.f32 %v299, %v530
        %v532 = vpop.f32.mrf.mxu0
        %v533 = vadd.f32 %v301, %v532
        %534 = vdwg.mxu0
        %v535 = vand.u32 %v194, 4294901760
        %v536 = vsub.f32 %v194, %v535
        %537 = vmatprep.subr.mxu0 %v536
        %v538 = vand.u32 %v193, 4294901760
        %v539 = vsub.f32 %v193, %v538
        %540 = vmatpush1.msra.mxu0 %v539
        %v541 = vand.u32 %v192, 4294901760
        %v542 = vsub.f32 %v192, %v541
        %543 = vmatprep.subr.mxu0 %v542
        %v544 = vand.u32 %v191, 4294901760
        %v545 = vsub.f32 %v191, %v544
        %546 = vmatpush1.msra.mxu0 %v545
        %v547 = vand.u32 %v190, 4294901760
        %v548 = vsub.f32 %v190, %v547
        %549 = vmatprep.subr.mxu0 %v548
        %v550 = vand.u32 %v189, 4294901760
        %v551 = vsub.f32 %v189, %v550
        %552 = vmatpush1.msra.mxu0 %v551
        %v553 = vand.u32 %v188, 4294901760
        %v554 = vsub.f32 %v188, %v553
        %555 = vmatprep.subr.mxu0 %v554
        %v556 = vand.u32 %v187, 4294901760
        %v557 = vsub.f32 %v187, %v556
        %558 = vmatpush1.msra.mxu0 %v557
        %v559 = vand.u32 %v186, 4294901760
        %v560 = vsub.f32 %v186, %v559
        %561 = vmatprep.subr.mxu0 %v560
        %v562 = vand.u32 %v185, 4294901760
        %v563 = vsub.f32 %v185, %v562
        %564 = vmatpush1.msra.mxu0 %v563
        %v565 = vand.u32 %v184, 4294901760
        %v566 = vsub.f32 %v184, %v565
        %567 = vmatprep.subr.mxu0 %v566
        %v568 = vand.u32 %v183, 4294901760
        %v569 = vsub.f32 %v183, %v568
        %570 = vmatpush1.msra.mxu0 %v569
        %v571 = vand.u32 %v182, 4294901760
        %v572 = vsub.f32 %v182, %v571
        %573 = vmatprep.subr.mxu0 %v572
        %v574 = vand.u32 %v181, 4294901760
        %v575 = vsub.f32 %v181, %v574
        %576 = vmatpush1.msra.mxu0 %v575
        %v577 = vand.u32 %v180, 4294901760
        %v578 = vsub.f32 %v180, %v577
        %579 = vmatprep.subr.mxu0 %v578
        %v580 = vand.u32 %v179, 4294901760
        %v581 = vsub.f32 %v179, %v580
        %582 = vmatpush1.msra.mxu0 %v581
        %v583 = vand.u32 %v178, 4294901760
        %v584 = vsub.f32 %v178, %v583
        %585 = vmatprep.subr.mxu0 %v584
        %v586 = vand.u32 %v177, 4294901760
        %v587 = vsub.f32 %v177, %v586
        %588 = vmatpush1.msra.mxu0 %v587
        %v589 = vand.u32 %v176, 4294901760
        %v590 = vsub.f32 %v176, %v589
        %591 = vmatprep.subr.mxu0 %v590
        %v592 = vand.u32 %v175, 4294901760
        %v593 = vsub.f32 %v175, %v592
        %594 = vmatpush1.msra.mxu0 %v593
        %v595 = vand.u32 %v174, 4294901760
        %v596 = vsub.f32 %v174, %v595
        %597 = vmatprep.subr.mxu0 %v596
        %v598 = vand.u32 %v173, 4294901760
        %v599 = vsub.f32 %v173, %v598
        %600 = vmatpush1.msra.mxu0 %v599
        %v601 = vand.u32 %v172, 4294901760
        %v602 = vsub.f32 %v172, %v601
        %603 = vmatprep.subr.mxu0 %v602
        %v604 = vand.u32 %v171, 4294901760
        %v605 = vsub.f32 %v171, %v604
        %606 = vmatpush1.msra.mxu0 %v605
        %v607 = vand.u32 %v170, 4294901760
        %v608 = vsub.f32 %v170, %v607
        %609 = vmatprep.subr.mxu0 %v608
        %v610 = vand.u32 %v169, 4294901760
        %v611 = vsub.f32 %v169, %v610
        %612 = vmatpush1.msra.mxu0 %v611
        %v613 = vand.u32 %v168, 4294901760
        %v614 = vsub.f32 %v168, %v613
        %615 = vmatprep.subr.mxu0 %v614
        %v616 = vand.u32 %v167, 4294901760
        %v617 = vsub.f32 %v167, %v616
        %618 = vmatpush1.msra.mxu0 %v617
        %v619 = vand.u32 %v166, 4294901760
        %v620 = vsub.f32 %v166, %v619
        %621 = vmatprep.subr.mxu0 %v620
        %v622 = vand.u32 %v165, 4294901760
        %v623 = vsub.f32 %v165, %v622
        %624 = vmatpush1.msra.mxu0 %v623
        %v625 = vand.u32 %v164, 4294901760
        %v626 = vsub.f32 %v164, %v625
        %627 = vmatprep.subr.mxu0 %v626
        %v628 = vand.u32 %v163, 4294901760
        %v629 = vsub.f32 %v163, %v628
        %630 = vmatpush1.msra.mxu0 %v629
        %631 = vmatprep.subr.mxu0 0.0
        %632 = vmatpush2.msra.mxu0 0.0
        %633 = vmatprep.subr.mxu0 0.0
        %634 = vmatpush2.msra.mxu0 0.0
        %635 = vmatprep.subr.mxu0 0.0
        %636 = vmatpush2.msra.mxu0 0.0
        %637 = vmatprep.subr.mxu0 0.0
        %638 = vmatpush2.msra.mxu0 0.0
        %639 = vmatprep.subr.mxu0 0.0
        %640 = vmatpush2.msra.mxu0 0.0
        %641 = vmatprep.subr.mxu0 0.0
        %642 = vmatpush2.msra.mxu0 0.0
        %643 = vmatprep.subr.mxu0 0.0
        %644 = vmatpush2.msra.mxu0 0.0
        %645 = vmatprep.subr.mxu0 0.0
        %646 = vmatpush2.msra.mxu0 0.0
        %647 = vmatprep.subr.mxu0 0.0
        %648 = vmatpush2.msra.mxu0 0.0
        %649 = vmatprep.subr.mxu0 0.0
        %650 = vmatpush2.msra.mxu0 0.0
        %651 = vmatprep.subr.mxu0 0.0
        %652 = vmatpush2.msra.mxu0 0.0
        %653 = vmatprep.subr.mxu0 0.0
        %654 = vmatpush2.msra.mxu0 0.0
        %655 = vmatprep.subr.mxu0 0.0
        %656 = vmatpush2.msra.mxu0 0.0
        %657 = vmatprep.subr.mxu0 0.0
        %658 = vmatpush2.msra.mxu0 0.0
        %659 = vmatprep.subr.mxu0 0.0
        %660 = vmatpush2.msra.mxu0 0.0
        %661 = vmatprep.subr.mxu0 0.0
        %662 = vmatpush2.msra.mxu0 0.0
        %663 = vmatprep.mubr.f32.mxu0 0.0
        %v664 = vand.u32 %v162, 4294901760
        %v665 = vsub.f32 %v162, %v664
        %666 = vmatmul.mubr.f32.gmra.mxu0 %v665
        %v667 = vpop.f32.mrf.mxu0
        %v668 = vadd.f32 %v531, %v667
        %v669 = vpop.f32.mrf.mxu0
        %v670 = vadd.f32 %v533, %v669
        %671 = vdwg.mxu0
        %v672 = vand.u32 %v194, 4294901760
        %673 = vmatprep.subr.mxu0 %v672
        %v674 = vand.u32 %v193, 4294901760
        %675 = vmatpush1.msra.mxu0 %v674
        %v676 = vand.u32 %v192, 4294901760
        %677 = vmatprep.subr.mxu0 %v676
        %v678 = vand.u32 %v191, 4294901760
        %679 = vmatpush1.msra.mxu0 %v678
        %v680 = vand.u32 %v190, 4294901760
        %681 = vmatprep.subr.mxu0 %v680
        %v682 = vand.u32 %v189, 4294901760
        %683 = vmatpush1.msra.mxu0 %v682
        %v684 = vand.u32 %v188, 4294901760
        %685 = vmatprep.subr.mxu0 %v684
        %v686 = vand.u32 %v187, 4294901760
        %687 = vmatpush1.msra.mxu0 %v686
        %v688 = vand.u32 %v186, 4294901760
        %689 = vmatprep.subr.mxu0 %v688
        %v690 = vand.u32 %v185, 4294901760
        %691 = vmatpush1.msra.mxu0 %v690
        %v692 = vand.u32 %v184, 4294901760
        %693 = vmatprep.subr.mxu0 %v692
        %v694 = vand.u32 %v183, 4294901760
        %695 = vmatpush1.msra.mxu0 %v694
        %v696 = vand.u32 %v182, 4294901760
        %697 = vmatprep.subr.mxu0 %v696
        %v698 = vand.u32 %v181, 4294901760
        %699 = vmatpush1.msra.mxu0 %v698
        %v700 = vand.u32 %v180, 4294901760
        %701 = vmatprep.subr.mxu0 %v700
        %v702 = vand.u32 %v179, 4294901760
        %703 = vmatpush1.msra.mxu0 %v702
        %v704 = vand.u32 %v178, 4294901760
        %705 = vmatprep.subr.mxu0 %v704
        %v706 = vand.u32 %v177, 4294901760
        %707 = vmatpush1.msra.mxu0 %v706
        %v708 = vand.u32 %v176, 4294901760
        %709 = vmatprep.subr.mxu0 %v708
        %v710 = vand.u32 %v175, 4294901760
        %711 = vmatpush1.msra.mxu0 %v710
        %v712 = vand.u32 %v174, 4294901760
        %713 = vmatprep.subr.mxu0 %v712
        %v714 = vand.u32 %v173, 4294901760
        %715 = vmatpush1.msra.mxu0 %v714
        %v716 = vand.u32 %v172, 4294901760
        %717 = vmatprep.subr.mxu0 %v716
        %v718 = vand.u32 %v171, 4294901760
        %719 = vmatpush1.msra.mxu0 %v718
        %v720 = vand.u32 %v170, 4294901760
        %721 = vmatprep.subr.mxu0 %v720
        %v722 = vand.u32 %v169, 4294901760
        %723 = vmatpush1.msra.mxu0 %v722
        %v724 = vand.u32 %v168, 4294901760
        %725 = vmatprep.subr.mxu0 %v724
        %v726 = vand.u32 %v167, 4294901760
        %727 = vmatpush1.msra.mxu0 %v726
        %v728 = vand.u32 %v166, 4294901760
        %729 = vmatprep.subr.mxu0 %v728
        %v730 = vand.u32 %v165, 4294901760
        %731 = vmatpush1.msra.mxu0 %v730
        %v732 = vand.u32 %v164, 4294901760
        %733 = vmatprep.subr.mxu0 %v732
        %v734 = vand.u32 %v163, 4294901760
        %735 = vmatpush1.msra.mxu0 %v734
        %736 = vmatprep.subr.mxu0 0.0
        %737 = vmatpush2.msra.mxu0 0.0
        %738 = vmatprep.subr.mxu0 0.0
        %739 = vmatpush2.msra.mxu0 0.0
        %740 = vmatprep.subr.mxu0 0.0
        %741 = vmatpush2.msra.mxu0 0.0
        %742 = vmatprep.subr.mxu0 0.0
        %743 = vmatpush2.msra.mxu0 0.0
        %744 = vmatprep.subr.mxu0 0.0
        %745 = vmatpush2.msra.mxu0 0.0
        %746 = vmatprep.subr.mxu0 0.0
        %747 = vmatpush2.msra.mxu0 0.0
        %748 = vmatprep.subr.mxu0 0.0
        %749 = vmatpush2.msra.mxu0 0.0
        %750 = vmatprep.subr.mxu0 0.0
        %751 = vmatpush2.msra.mxu0 0.0
        %752 = vmatprep.subr.mxu0 0.0
        %753 = vmatpush2.msra.mxu0 0.0
        %754 = vmatprep.subr.mxu0 0.0
        %755 = vmatpush2.msra.mxu0 0.0
        %756 = vmatprep.subr.mxu0 0.0
        %757 = vmatpush2.msra.mxu0 0.0
        %758 = vmatprep.subr.mxu0 0.0
        %759 = vmatpush2.msra.mxu0 0.0
        %760 = vmatprep.subr.mxu0 0.0
        %761 = vmatpush2.msra.mxu0 0.0
        %762 = vmatprep.subr.mxu0 0.0
        %763 = vmatpush2.msra.mxu0 0.0
        %764 = vmatprep.subr.mxu0 0.0
        %765 = vmatpush2.msra.mxu0 0.0
        %766 = vmatprep.subr.mxu0 0.0
        %767 = vmatpush2.msra.mxu0 0.0
        %768 = vmatprep.mubr.f32.mxu0 0.0
        %v769 = vand.u32 %v162, 4294901760
        %v770 = vsub.f32 %v162, %v769
        %v771 = vand.u32 %v770, 4294901760
        %772 = vmatmul.mubr.f32.gmra.mxu0 %v771
        %v773 = vpop.f32.mrf.mxu0
        %v774 = vadd.f32 %v668, %v773
        %v775 = vpop.f32.mrf.mxu0
        %v776 = vadd.f32 %v670, %v775
        %777 = vdwg.mxu0
        %v778 = vand.u32 %v194, 4294901760
        %v779 = vsub.f32 %v194, %v778
        %v780 = vand.u32 %v779, 4294901760
        %781 = vmatprep.subr.mxu0 %v780
        %v782 = vand.u32 %v193, 4294901760
        %v783 = vsub.f32 %v193, %v782
        %v784 = vand.u32 %v783, 4294901760
        %785 = vmatpush1.msra.mxu0 %v784
        %v786 = vand.u32 %v192, 4294901760
        %v787 = vsub.f32 %v192, %v786
        %v788 = vand.u32 %v787, 4294901760
        %789 = vmatprep.subr.mxu0 %v788
        %v790 = vand.u32 %v191, 4294901760
        %v791 = vsub.f32 %v191, %v790
        %v792 = vand.u32 %v791, 4294901760
        %793 = vmatpush1.msra.mxu0 %v792
        %v794 = vand.u32 %v190, 4294901760
        %v795 = vsub.f32 %v190, %v794
        %v796 = vand.u32 %v795, 4294901760
        %797 = vmatprep.subr.mxu0 %v796
        %v798 = vand.u32 %v189, 4294901760
        %v799 = vsub.f32 %v189, %v798
        %v800 = vand.u32 %v799, 4294901760
        %801 = vmatpush1.msra.mxu0 %v800
        %v802 = vand.u32 %v188, 4294901760
        %v803 = vsub.f32 %v188, %v802
        %v804 = vand.u32 %v803, 4294901760
        %805 = vmatprep.subr.mxu0 %v804
        %v806 = vand.u32 %v187, 4294901760
        %v807 = vsub.f32 %v187, %v806
        %v808 = vand.u32 %v807, 4294901760
        %809 = vmatpush1.msra.mxu0 %v808
        %v810 = vand.u32 %v186, 4294901760
        %v811 = vsub.f32 %v186, %v810
        %v812 = vand.u32 %v811, 4294901760
        %813 = vmatprep.subr.mxu0 %v812
        %v814 = vand.u32 %v185, 4294901760
        %v815 = vsub.f32 %v185, %v814
        %v816 = vand.u32 %v815, 4294901760
        %817 = vmatpush1.msra.mxu0 %v816
        %v818 = vand.u32 %v184, 4294901760
        %v819 = vsub.f32 %v184, %v818
        %v820 = vand.u32 %v819, 4294901760
        %821 = vmatprep.subr.mxu0 %v820
        %v822 = vand.u32 %v183, 4294901760
        %v823 = vsub.f32 %v183, %v822
        %v824 = vand.u32 %v823, 4294901760
        %825 = vmatpush1.msra.mxu0 %v824
        %v826 = vand.u32 %v182, 4294901760
        %v827 = vsub.f32 %v182, %v826
        %v828 = vand.u32 %v827, 4294901760
        %829 = vmatprep.subr.mxu0 %v828
        %v830 = vand.u32 %v181, 4294901760
        %v831 = vsub.f32 %v181, %v830
        %v832 = vand.u32 %v831, 4294901760
        %833 = vmatpush1.msra.mxu0 %v832
        %v834 = vand.u32 %v180, 4294901760
        %v835 = vsub.f32 %v180, %v834
        %v836 = vand.u32 %v835, 4294901760
        %837 = vmatprep.subr.mxu0 %v836
        %v838 = vand.u32 %v179, 4294901760
        %v839 = vsub.f32 %v179, %v838
        %v840 = vand.u32 %v839, 4294901760
        %841 = vmatpush1.msra.mxu0 %v840
        %v842 = vand.u32 %v178, 4294901760
        %v843 = vsub.f32 %v178, %v842
        %v844 = vand.u32 %v843, 4294901760
        %845 = vmatprep.subr.mxu0 %v844
        %v846 = vand.u32 %v177, 4294901760
        %v847 = vsub.f32 %v177, %v846
        %v848 = vand.u32 %v847, 4294901760
        %849 = vmatpush1.msra.mxu0 %v848
        %v850 = vand.u32 %v176, 4294901760
        %v851 = vsub.f32 %v176, %v850
        %v852 = vand.u32 %v851, 4294901760
        %853 = vmatprep.subr.mxu0 %v852
        %v854 = vand.u32 %v175, 4294901760
        %v855 = vsub.f32 %v175, %v854
        %v856 = vand.u32 %v855, 4294901760
        %857 = vmatpush1.msra.mxu0 %v856
        %v858 = vand.u32 %v174, 4294901760
        %v859 = vsub.f32 %v174, %v858
        %v860 = vand.u32 %v859, 4294901760
        %861 = vmatprep.subr.mxu0 %v860
        %v862 = vand.u32 %v173, 4294901760
        %v863 = vsub.f32 %v173, %v862
        %v864 = vand.u32 %v863, 4294901760
        %865 = vmatpush1.msra.mxu0 %v864
        %v866 = vand.u32 %v172, 4294901760
        %v867 = vsub.f32 %v172, %v866
        %v868 = vand.u32 %v867, 4294901760
        %869 = vmatprep.subr.mxu0 %v868
        %v870 = vand.u32 %v171, 4294901760
        %v871 = vsub.f32 %v171, %v870
        %v872 = vand.u32 %v871, 4294901760
        %873 = vmatpush1.msra.mxu0 %v872
        %v874 = vand.u32 %v170, 4294901760
        %v875 = vsub.f32 %v170, %v874
        %v876 = vand.u32 %v875, 4294901760
        %877 = vmatprep.subr.mxu0 %v876
        %v878 = vand.u32 %v169, 4294901760
        %v879 = vsub.f32 %v169, %v878
        %v880 = vand.u32 %v879, 4294901760
        %881 = vmatpush1.msra.mxu0 %v880
        %v882 = vand.u32 %v168, 4294901760
        %v883 = vsub.f32 %v168, %v882
        %v884 = vand.u32 %v883, 4294901760
        %885 = vmatprep.subr.mxu0 %v884
        %v886 = vand.u32 %v167, 4294901760
        %v887 = vsub.f32 %v167, %v886
        %v888 = vand.u32 %v887, 4294901760
        %889 = vmatpush1.msra.mxu0 %v888
        %v890 = vand.u32 %v166, 4294901760
        %v891 = vsub.f32 %v166, %v890
        %v892 = vand.u32 %v891, 4294901760
        %893 = vmatprep.subr.mxu0 %v892
        %v894 = vand.u32 %v165, 4294901760
        %v895 = vsub.f32 %v165, %v894
        %v896 = vand.u32 %v895, 4294901760
        %897 = vmatpush1.msra.mxu0 %v896
        %v898 = vand.u32 %v164, 4294901760
        %v899 = vsub.f32 %v164, %v898
        %v900 = vand.u32 %v899, 4294901760
        %901 = vmatprep.subr.mxu0 %v900
        %v902 = vand.u32 %v163, 4294901760
        %v903 = vsub.f32 %v163, %v902
        %v904 = vand.u32 %v903, 4294901760
        %905 = vmatpush1.msra.mxu0 %v904
        %906 = vmatprep.subr.mxu0 0.0
        %907 = vmatpush2.msra.mxu0 0.0
        %908 = vmatprep.subr.mxu0 0.0
        %909 = vmatpush2.msra.mxu0 0.0
        %910 = vmatprep.subr.mxu0 0.0
        %911 = vmatpush2.msra.mxu0 0.0
        %912 = vmatprep.subr.mxu0 0.0
        %913 = vmatpush2.msra.mxu0 0.0
        %914 = vmatprep.subr.mxu0 0.0
        %915 = vmatpush2.msra.mxu0 0.0
        %916 = vmatprep.subr.mxu0 0.0
        %917 = vmatpush2.msra.mxu0 0.0
        %918 = vmatprep.subr.mxu0 0.0
        %919 = vmatpush2.msra.mxu0 0.0
        %920 = vmatprep.subr.mxu0 0.0
        %921 = vmatpush2.msra.mxu0 0.0
        %922 = vmatprep.subr.mxu0 0.0
        %923 = vmatpush2.msra.mxu0 0.0
        %924 = vmatprep.subr.mxu0 0.0
        %925 = vmatpush2.msra.mxu0 0.0
        %926 = vmatprep.subr.mxu0 0.0
        %927 = vmatpush2.msra.mxu0 0.0
        %928 = vmatprep.subr.mxu0 0.0
        %929 = vmatpush2.msra.mxu0 0.0
        %930 = vmatprep.subr.mxu0 0.0
        %931 = vmatpush2.msra.mxu0 0.0
        %932 = vmatprep.subr.mxu0 0.0
        %933 = vmatpush2.msra.mxu0 0.0
        %934 = vmatprep.subr.mxu0 0.0
        %935 = vmatpush2.msra.mxu0 0.0
        %936 = vmatprep.subr.mxu0 0.0
        %937 = vmatpush2.msra.mxu0 0.0
        %938 = vmatprep.mubr.f32.mxu0 0.0
        %v939 = vand.u32 %v162, 4294901760
        %940 = vmatmul.mubr.f32.gmra.mxu0 %v939
        %v941 = vpop.f32.mrf.mxu0
        %v942 = vadd.f32 %v774, %v941
        %v943 = vpop.f32.mrf.mxu0
        %v944 = vadd.f32 %v776, %v943
        %945 = vdwg.mxu0
        %v946 = vand.u32 %v194, 4294901760
        %947 = vmatprep.subr.mxu0 %v946
        %v948 = vand.u32 %v193, 4294901760
        %949 = vmatpush1.msra.mxu0 %v948
        %v950 = vand.u32 %v192, 4294901760
        %951 = vmatprep.subr.mxu0 %v950
        %v952 = vand.u32 %v191, 4294901760
        %953 = vmatpush1.msra.mxu0 %v952
        %v954 = vand.u32 %v190, 4294901760
        %955 = vmatprep.subr.mxu0 %v954
        %v956 = vand.u32 %v189, 4294901760
        %957 = vmatpush1.msra.mxu0 %v956
        %v958 = vand.u32 %v188, 4294901760
        %959 = vmatprep.subr.mxu0 %v958
        %v960 = vand.u32 %v187, 4294901760
        %961 = vmatpush1.msra.mxu0 %v960
        %v962 = vand.u32 %v186, 4294901760
        %963 = vmatprep.subr.mxu0 %v962
        %v964 = vand.u32 %v185, 4294901760
        %965 = vmatpush1.msra.mxu0 %v964
        %v966 = vand.u32 %v184, 4294901760
        %967 = vmatprep.subr.mxu0 %v966
        %v968 = vand.u32 %v183, 4294901760
        %969 = vmatpush1.msra.mxu0 %v968
        %v970 = vand.u32 %v182, 4294901760
        %971 = vmatprep.subr.mxu0 %v970
        %v972 = vand.u32 %v181, 4294901760
        %973 = vmatpush1.msra.mxu0 %v972
        %v974 = vand.u32 %v180, 4294901760
        %975 = vmatprep.subr.mxu0 %v974
        %v976 = vand.u32 %v179, 4294901760
        %977 = vmatpush1.msra.mxu0 %v976
        %v978 = vand.u32 %v178, 4294901760
        %979 = vmatprep.subr.mxu0 %v978
        %v980 = vand.u32 %v177, 4294901760
        %981 = vmatpush1.msra.mxu0 %v980
        %v982 = vand.u32 %v176, 4294901760
        %983 = vmatprep.subr.mxu0 %v982
        %v984 = vand.u32 %v175, 4294901760
        %985 = vmatpush1.msra.mxu0 %v984
        %v986 = vand.u32 %v174, 4294901760
        %987 = vmatprep.subr.mxu0 %v986
        %v988 = vand.u32 %v173, 4294901760
        %989 = vmatpush1.msra.mxu0 %v988
        %v990 = vand.u32 %v172, 4294901760
        %991 = vmatprep.subr.mxu0 %v990
        %v992 = vand.u32 %v171, 4294901760
        %993 = vmatpush1.msra.mxu0 %v992
        %v994 = vand.u32 %v170, 4294901760
        %995 = vmatprep.subr.mxu0 %v994
        %v996 = vand.u32 %v169, 4294901760
        %997 = vmatpush1.msra.mxu0 %v996
        %v998 = vand.u32 %v168, 4294901760
        %999 = vmatprep.subr.mxu0 %v998
        %v1000 = vand.u32 %v167, 4294901760
        %1001 = vmatpush1.msra.mxu0 %v1000
        %v1002 = vand.u32 %v166, 4294901760
        %1003 = vmatprep.subr.mxu0 %v1002
        %v1004 = vand.u32 %v165, 4294901760
        %1005 = vmatpush1.msra.mxu0 %v1004
        %v1006 = vand.u32 %v164, 4294901760
        %1007 = vmatprep.subr.mxu0 %v1006
        %v1008 = vand.u32 %v163, 4294901760
        %1009 = vmatpush1.msra.mxu0 %v1008
        %1010 = vmatprep.subr.mxu0 0.0
        %1011 = vmatpush2.msra.mxu0 0.0
        %1012 = vmatprep.subr.mxu0 0.0
        %1013 = vmatpush2.msra.mxu0 0.0
        %1014 = vmatprep.subr.mxu0 0.0
        %1015 = vmatpush2.msra.mxu0 0.0
        %1016 = vmatprep.subr.mxu0 0.0
        %1017 = vmatpush2.msra.mxu0 0.0
        %1018 = vmatprep.subr.mxu0 0.0
        %1019 = vmatpush2.msra.mxu0 0.0
        %1020 = vmatprep.subr.mxu0 0.0
        %1021 = vmatpush2.msra.mxu0 0.0
        %1022 = vmatprep.subr.mxu0 0.0
        %1023 = vmatpush2.msra.mxu0 0.0
        %1024 = vmatprep.subr.mxu0 0.0
        %1025 = vmatpush2.msra.mxu0 0.0
        %1026 = vmatprep.subr.mxu0 0.0
        %1027 = vmatpush2.msra.mxu0 0.0
        %1028 = vmatprep.subr.mxu0 0.0
        %1029 = vmatpush2.msra.mxu0 0.0
        %1030 = vmatprep.subr.mxu0 0.0
        %1031 = vmatpush2.msra.mxu0 0.0
        %1032 = vmatprep.subr.mxu0 0.0
        %1033 = vmatpush2.msra.mxu0 0.0
        %1034 = vmatprep.subr.mxu0 0.0
        %1035 = vmatpush2.msra.mxu0 0.0
        %1036 = vmatprep.subr.mxu0 0.0
        %1037 = vmatpush2.msra.mxu0 0.0
        %1038 = vmatprep.subr.mxu0 0.0
        %1039 = vmatpush2.msra.mxu0 0.0
        %1040 = vmatprep.subr.mxu0 0.0
        %1041 = vmatpush2.msra.mxu0 0.0
        %1042 = vmatprep.mubr.f32.mxu0 0.0
        %v1043 = vand.u32 %v162, 4294901760
        %1044 = vmatmul.mubr.f32.gmra.mxu0 %v1043
        %v1045 = vpop.f32.mrf.mxu0
        %v1046 = vadd.f32 %v942, %v1045
        %v1047 = vpop.f32.mrf.mxu0
        %v1048 = vadd.f32 %v944, %v1047
        %1049 = vdwg.mxu0
        %1050 = vst [vmem:[%s149] sm:$0xff] %v1046
        %1051 = vst [vmem:[%s149 + $0x8] sm:$0xff] %v1048
        %s1052 = sand.u32 %s72, 1
        %s1053 = scalar_lea.sflag [#allocation4], %s1052
        %s1054 = sand.u32 %s72, 1
        %s1055 = smul.addr %s1054, 16
        %s1056 = scalar_lea.vmem [#allocation5], %s1055
        // Predicated region
        $region33: #{tpu_custom_call.1} parent=27 // pred_check
          %p1057 = pneg %p82
        $region34: #{tpu_custom_call.1} parent=27 // pred_check_branch
          %1059 = sbr.rel (%p1057) target = $region36
        $region35: #{tpu_custom_call.1} parent=27 // pred_region
          %s1061 = ssub.s32 256, 256
          %1062 = vsyncadd %s1053, %s1061
          %s1063 = smul.addr %s17, 2
          %s1064 = smul.addr %s1063, 128
          %s1065 = scalar_lea.hbm %s2, %s1064
          %s1067 = sshll.u32 %s1056, 4
          %s1068 = int_to_ptr.vmem [resolvable:$true] %s1067
          %1070 = dma.vmem_to_hbm [thread:$0]  %s1068, 256, %s1065, %s1053
        $region36: #{tpu_custom_call.1} parent=27 // pred_fallthru
          _
      $region28: #{tpu_custom_call.1} parent=5 // pred_fallthru
        _
      %p1071 = scmp.le.s32.totalorder 2, %s12
      // Predicated region
      $region37: #{tpu_custom_call.1} parent=5 // pred_check
        %p1072 = pneg %p1071
      $region38: #{tpu_custom_call.1} parent=5 // pred_check_branch
        %1074 = sbr.rel (%p1072) target = $region40
      $region39: #{tpu_custom_call.1} parent=5 // pred_region
        %s1075 = ssub.s32 %s12, 2
        // Predicated region
        $region41: #{tpu_custom_call.1} parent=39 // pred_check
          %p1076 = pneg %p88
        $region42: #{tpu_custom_call.1} parent=39 // pred_check_branch
          %1078 = sbr.rel (%p1076) target = $region44
        $region43: #{tpu_custom_call.1} parent=39 // pred_region
          %s1079 = sand.u32 %s73, 1
          %s1080 = scalar_lea.sflag [#allocation4], %s1079
          %s1081 = sand.u32 %s73, 1
          %s1082 = smul.addr %s1081, 16
          %s1083 = scalar_lea.vmem [#allocation5], %s1082
          %1084 = dma.done %s1080, 256
        $region44: #{tpu_custom_call.1} parent=39 // pred_fallthru
          _
      $region40: #{tpu_custom_call.1} parent=5 // pred_fallthru
        _
    $region6: #{tpu_custom_call.1} parent=1 // loop_footer
      %s16 = sadd.s32 1, %s12
    $region7: #{tpu_custom_call.1} parent=1 // loop_footer_branch
      %11 = sbr.rel target = $region3
    $region8: #{tpu_custom_call.1} parent=1 // loop_exit
      _
    %1085 = vsyncpa [#allocation3], 1
    %s1086 = scalar_lea.sflag [#allocation3], 1
    %1087 = vsyncpa %s1086, 1
    %1088 = vsyncpa [#allocation4], 1
    %s1089 = scalar_lea.sflag [#allocation4], 1
    %1090 = vsyncpa %s1089, 1

</llo_original>
